<compile_context>
chip_gen: v5e
topology: v5e:2x2
jax: 0.10.0
libtpu: 0.0.40
codegen_flags: <defaults>
</compile_context>

<pallas_src>
import jax
import jax.numpy as jnp
from jax.experimental import pallas as pl
from jax.experimental.pallas import tpu as pltpu


def _fused_heads_kernel(x_ref, w1_ref, b1_ref, w2_ref, b2_ref, out_ref):
    """Both heads for one tile of rows (flattened B*T), fully fused.

    x:   (tm, 2H)  bf16     w1: (2H, 4H)  bf16 = [w1_doa | w1_sde]
    w2:  (4H, Np)  bf16     block-structured, cols class-major [x,y,z,sde] + 0-pad
    out: (tm, Np)  f32      first 4*C columns reshape directly to (tm, C, 4)
    """
    # Fused first layers: one bf16 MXU push for both heads, f32 accumulate.
    h = jnp.dot(x_ref[...], w1_ref[...],
                preferred_element_type=jnp.float32) + b1_ref[...]   # (tm, 4H) f32

    # Fused second layers: one bf16 MXU push into a lane-dense (padded) N.
    y = jnp.dot(h.astype(jnp.bfloat16), w2_ref[...],
                preferred_element_type=jnp.float32) + b2_ref[...]   # (tm, Np) f32

    # Column c*4+3 -> SDE (ReLU), others -> DOA (Tanh); zero-padded cols stay 0.
    col = jax.lax.broadcasted_iota(jnp.int32, y.shape, dimension=1)
    is_sde = (col & 3) == 3
    out_ref[...] = jnp.where(is_sde, jnp.maximum(y, 0.0), jnp.tanh(y))


def prepare_fused_params(params, num_classes):
    """Host-side fusion of the four Linear layers into two wide bf16 weights.

    Hoisted out of the forward path: call once at init, reuse every forward.
    Returns (w1_bf16, b1_f32, w2_bf16, b2_f32) with the second-layer output
    width zero-padded up to a multiple of 128 lanes.
    """
    (w1d, b1d, w2d, b2d, w1s, b1s, w2s, b2s) = params
    H2 = w1d.shape[0]
    C = num_classes
    C4 = 4 * C
    C4p = max(128, -(-C4 // 128) * 128)          # lane-dense output width

    # Layer 1: (2H, 4H) = [doa | sde]
    w1 = jnp.concatenate([w1d, w1s], axis=1)
    b1 = jnp.concatenate([b1d, b1s], axis=1)

    # Layer 2: block-structured (4H, 4C), columns class-major [x, y, z, sde].
    #   rows 0:2H   consume the DOA hidden  (zero on SDE columns)
    #   rows 2H:4H  consume the SDE hidden  (zero on DOA columns)
    w2d_r = w2d.reshape(H2, C, 3)
    w2s_r = w2s.reshape(H2, C, 1)
    top = jnp.concatenate(
        [w2d_r, jnp.zeros((H2, C, 1), w2d.dtype)], axis=-1).reshape(H2, C4)
    bot = jnp.concatenate(
        [jnp.zeros((H2, C, 3), w2s.dtype), w2s_r], axis=-1).reshape(H2, C4)
    w2 = jnp.concatenate([top, bot], axis=0)                          # (4H, 4C)
    b2 = jnp.concatenate(
        [b2d.reshape(1, C, 3), b2s.reshape(1, C, 1)], axis=-1).reshape(1, C4)

    # Zero-pad N up to a multiple of 128 so stores are unmasked / lane-dense.
    if C4p != C4:
        w2 = jnp.pad(w2, ((0, 0), (0, C4p - C4)))
        b2 = jnp.pad(b2, ((0, 0), (0, C4p - C4)))

    # bf16 MXU operands; biases stay f32 (bias add + activations run in f32).
    return (w1.astype(jnp.bfloat16), b1.astype(jnp.float32),
            w2.astype(jnp.bfloat16), b2.astype(jnp.float32))


def _pick_tile_and_vmem(M, F2, H4, C4p):
    """Derive row-tile size and vmem limit from this generation's VMEM."""
    try:
        info = pltpu.get_tpu_info()
        vmem_cap = int(getattr(info, "vmem_capacity_bytes", 64 * 1024 * 1024))
    except Exception:
        vmem_cap = 64 * 1024 * 1024            # conservative (v7x per-TC VMEM)
    budget = (vmem_cap * 3) // 4               # headroom for compiler scratch

    # Resident fused weights/biases (counted double-buffered to be safe).
    resident = 2 * (F2 * H4 * 2 + H4 * 4 + H4 * C4p * 2 + C4p * 4)

    def cost(tm):
        return (resident
                + 2 * tm * F2 * 2              # x tiles, bf16, double-buffered
                + 2 * tm * C4p * 4             # out tiles, f32, double-buffered
                + tm * H4 * 4                  # f32 intermediate h
                + tm * C4p * 4)                # f32 intermediate y

    tm = 8
    for cand in (2048, 1024, 512, 256, 128, 64, 32, 16, 8):
        if cost(cand) <= budget:
            tm = cand
            break
    # Keep >= 2 grid steps when possible so megacore (v7x) can split the rows.
    while tm > 8 and pl.cdiv(M, tm) < 2:
        tm //= 2
    vmem_limit = max(16 * 1024 * 1024, min(budget, cost(tm) + (8 << 20)))
    return tm, int(vmem_limit)


def multitask_seld_heads(x, fused_params, num_classes, *, tm=None):
    """x: (B, T, 2*hidden) backbone features -> (B, T, num_classes, 4)."""
    w1, b1, w2, b2 = fused_params
    B, T, F2 = x.shape
    M = B * T
    C4 = 4 * num_classes
    H4 = w1.shape[1]
    C4p = w2.shape[1]

    if tm is None:
        tm, vmem_limit = _pick_tile_and_vmem(M, F2, H4, C4p)
    else:
        _, vmem_limit = _pick_tile_and_vmem(M, F2, H4, C4p)

    # bf16 activations for the MXU (fuses with the producer under jit).
    xf = x.reshape(M, F2).astype(jnp.bfloat16)

    # No host-side padding of the rows: ragged last block, OOB rows dropped.
    # TODO(synk): if 2H is not a multiple of 128 (K under-fills the MXU),
    # padding x's feature dim would cost an extra activation pass; skipped.
    grid = (pl.cdiv(M, tm),)

    out_flat = pl.pallas_call(
        _fused_heads_kernel,
        out_shape=jax.ShapeDtypeStruct((M, C4p), jnp.float32),
        grid_spec=pltpu.PrefetchScalarGridSpec(
            num_scalar_prefetch=0,
            grid=grid,
            in_specs=[
                pl.BlockSpec((tm, F2), lambda i: (i, 0)),    # x tile (bf16)
                pl.BlockSpec((F2, H4), lambda i: (0, 0)),    # fused W1 (bf16)
                pl.BlockSpec((1, H4), lambda i: (0, 0)),     # fused b1 (f32)
                pl.BlockSpec((H4, C4p), lambda i: (0, 0)),   # fused W2 (bf16)
                pl.BlockSpec((1, C4p), lambda i: (0, 0)),    # fused b2 (f32)
            ],
            out_specs=pl.BlockSpec((tm, C4p), lambda i: (i, 0)),
        ),
        compiler_params=pltpu.CompilerParams(
            dimension_semantics=("parallel",),
            vmem_limit_bytes=vmem_limit,
        ),
    )(xf, w1, b1, w2, b2)

    if C4p != C4:
        out_flat = out_flat[:, :C4]
    return out_flat.reshape(B, T, num_classes, 4)


def init_params(key, hidden_dim, num_classes):
    """Deterministic params matching the nn.Linear shapes.

    PyTorch Linear stores W as (out, in); we keep (in, out) so the kernel can
    use x @ W directly (mathematically identical to x @ W_torch.T).
    """
    H2 = hidden_dim * 2
    ks = jax.random.split(key, 8)
    scale = 1.0 / jnp.sqrt(H2)

    def lin(kw, kb, din, dout):
        w = jax.random.uniform(kw, (din, dout), jnp.float32, -scale, scale)
        b = jax.random.uniform(kb, (1, dout), jnp.float32, -scale, scale)
        return w, b

    w1d, b1d = lin(ks[0], ks[1], H2, H2)
    w2d, b2d = lin(ks[2], ks[3], H2, num_classes * 3)
    w1s, b1s = lin(ks[4], ks[5], H2, H2)
    w2s, b2s = lin(ks[6], ks[7], H2, num_classes)
    return (w1d, b1d, w2d, b2d, w1s, b1s, w2s, b2s)


def reference_jax(x, params, num_classes):
    """Pure-JAX f32 reference mirroring the PyTorch forward (unfused)."""
    (w1d, b1d, w2d, b2d, w1s, b1s, w2s, b2s) = params
    doa = jnp.tanh((x @ w1d + b1d) @ w2d + b2d)
    sde = jnp.maximum((x @ w1s + b1s) @ w2s + b2s, 0.0)
    B, T = x.shape[:2]
    doa = doa.reshape(B, T, num_classes, 3)
    sde = sde.reshape(B, T, num_classes, 1)
    return jnp.concatenate([doa, sde], axis=-1)


if __name__ == "__main__":
    # Small shapes consistent with the module: batch=2, seq=8, hidden=32
    # -> backbone feature dim = hidden*2 = 64, num_classes=4.
    B, T, hidden_dim, num_classes = 2, 8, 32, 4

    key = jax.random.PRNGKey(0)
    kx, kp = jax.random.split(key)
    x = jax.random.normal(kx, (B, T, hidden_dim * 2), jnp.float32)
    params = init_params(kp, hidden_dim, num_classes)

    # Fusion (and bf16 cast / zero padding) done once, outside the forward.
    fused = prepare_fused_params(params, num_classes)
    fused = jax.tree_util.tree_map(jax.block_until_ready, fused)

    fwd = jax.jit(lambda xx, fp: multitask_seld_heads(xx, fp, num_classes))
    out = jax.block_until_ready(fwd(x, fused))

    ref = reference_jax(x, params, num_classes)
    assert out.shape == (B, T, num_classes, 4), out.shape
    # bf16 MXU operands with f32 accumulation -> relaxed tolerance vs f32 ref.
    assert jnp.allclose(out, ref, atol=5e-2, rtol=5e-2), (
        "mismatch vs reference: max abs diff "
        f"{float(jnp.max(jnp.abs(out - ref)))}")

    print("KERNEL_OK")
</pallas_src>

<mosaic_0001>
module attributes {stable_mosaic.version = 11 : i64} {
  func.func @_fused_heads_kernel(%arg0: i32, %arg1: memref<8x64xbf16, #tpu.memory_space<vmem>>, %arg2: memref<64x128xbf16, #tpu.memory_space<vmem>>, %arg3: memref<1x128xf32, #tpu.memory_space<vmem>>, %arg4: memref<128x128xbf16, #tpu.memory_space<vmem>>, %arg5: memref<1x128xf32, #tpu.memory_space<vmem>>, %arg6: memref<8x128xf32, #tpu.memory_space<vmem>>) attributes {dimension_semantics = [#tpu.dimension_semantics<parallel>], iteration_bounds = array<i64: 2>, scalar_prefetch = 0 : i64, scratch_operands = 0 : i64, tpu.core_type = #tpu.core_type<tc>, window_params = [{transform_indices = @transform_0, window_bounds = array<i64: 8, 64>}, {pipeline_mode = #tpu.pipeline_mode<synchronous>, transform_indices = @transform_1, window_bounds = array<i64: 64, 128>}, {pipeline_mode = #tpu.pipeline_mode<synchronous>, transform_indices = @transform_2, window_bounds = array<i64: 1, 128>}, {pipeline_mode = #tpu.pipeline_mode<synchronous>, transform_indices = @transform_3, window_bounds = array<i64: 128, 128>}, {pipeline_mode = #tpu.pipeline_mode<synchronous>, transform_indices = @transform_4, window_bounds = array<i64: 1, 128>}, {transform_indices = @transform_5, window_bounds = array<i64: 8, 128>}]} {
    %c0 = arith.constant 0 : index
    %c0_0 = arith.constant 0 : index
    %0 = vector.load %arg1[%c0, %c0_0] : memref<8x64xbf16, #tpu.memory_space<vmem>>, vector<8x64xbf16>
    %c0_1 = arith.constant 0 : index
    %c0_2 = arith.constant 0 : index
    %1 = vector.load %arg2[%c0_1, %c0_2] : memref<64x128xbf16, #tpu.memory_space<vmem>>, vector<64x128xbf16>
    %cst = arith.constant dense<0.000000e+00> : vector<8x128xf32>
    %2 = tpu.matmul %0, %1, %cst {dimension_numbers = #tpu.dot_dimension_numbers<[1], [0], [0], [1], [0, 0, 1, 1], [], []>} : vector<8x64xbf16>, vector<64x128xbf16>, vector<8x128xf32> -> vector<8x128xf32>
    %c0_3 = arith.constant 0 : index
    %c0_4 = arith.constant 0 : index
    %3 = vector.load %arg3[%c0_3, %c0_4] : memref<1x128xf32, #tpu.memory_space<vmem>>, vector<1x128xf32>
    %4 = vector.broadcast %3 : vector<1x128xf32> to vector<8x128xf32>
    %5 = arith.addf %2, %4 : vector<8x128xf32>
    %6 = arith.truncf %5 : vector<8x128xf32> to vector<8x128xbf16>
    %c0_5 = arith.constant 0 : index
    %c0_6 = arith.constant 0 : index
    %7 = vector.load %arg4[%c0_5, %c0_6] : memref<128x128xbf16, #tpu.memory_space<vmem>>, vector<128x128xbf16>
    %cst_7 = arith.constant dense<0.000000e+00> : vector<8x128xf32>
    %8 = tpu.matmul %6, %7, %cst_7 {dimension_numbers = #tpu.dot_dimension_numbers<[1], [0], [0], [1], [0, 0, 1, 1], [], []>} : vector<8x128xbf16>, vector<128x128xbf16>, vector<8x128xf32> -> vector<8x128xf32>
    %c0_8 = arith.constant 0 : index
    %c0_9 = arith.constant 0 : index
    %9 = vector.load %arg5[%c0_8, %c0_9] : memref<1x128xf32, #tpu.memory_space<vmem>>, vector<1x128xf32>
    %10 = vector.broadcast %9 : vector<1x128xf32> to vector<8x128xf32>
    %11 = arith.addf %8, %10 : vector<8x128xf32>
    %12 = tpu.iota {dimensions = array<i32: 1>} : vector<8x128xi32>
    %c3_i32 = arith.constant 3 : i32
    %13 = vector.broadcast %c3_i32 : i32 to vector<8x128xi32>
    %14 = arith.andi %12, %13 : vector<8x128xi32>
    %c3_i32_10 = arith.constant 3 : i32
    %15 = vector.broadcast %c3_i32_10 : i32 to vector<8x128xi32>
    %16 = arith.cmpi eq, %14, %15 : vector<8x128xi32>
    %cst_11 = arith.constant 0.000000e+00 : f32
    %17 = vector.broadcast %cst_11 : f32 to vector<8x128xf32>
    %18 = arith.maximumf %11, %17 : vector<8x128xf32>
    %19 = math.tanh %11 : vector<8x128xf32>
    %20 = arith.select %16, %18, %19 : vector<8x128xi1>, vector<8x128xf32>
    %c0_12 = arith.constant 0 : index
    %c0_13 = arith.constant 0 : index
    %21 = vector.load %arg6[%c0_12, %c0_13] : memref<8x128xf32, #tpu.memory_space<vmem>>, vector<8x128xf32>
    tpu.vector_store %arg6[%c0_12, %c0_13], %20 {strides = array<i32>} : memref<8x128xf32, #tpu.memory_space<vmem>>, vector<8x128xf32>,
    return
  }
  func.func @transform_0(%arg0: i32) -> (i32, i32) {
    %c0_i32 = arith.constant 0 : i32
    %c0_i32_0 = arith.constant 0 : i32
    return %arg0, %c0_i32 : i32, i32
  }
  func.func @transform_1(%arg0: i32) -> (i32, i32) {
    %c0_i32 = arith.constant 0 : i32
    %c0_i32_0 = arith.constant 0 : i32
    %c0_i32_1 = arith.constant 0 : i32
    return %c0_i32, %c0_i32_0 : i32, i32
  }
  func.func @transform_2(%arg0: i32) -> (i32, i32) {
    %c0_i32 = arith.constant 0 : i32
    %c0_i32_0 = arith.constant 0 : i32
    %c0_i32_1 = arith.constant 0 : i32
    return %c0_i32, %c0_i32_0 : i32, i32
  }
  func.func @transform_3(%arg0: i32) -> (i32, i32) {
    %c0_i32 = arith.constant 0 : i32
    %c0_i32_0 = arith.constant 0 : i32
    %c0_i32_1 = arith.constant 0 : i32
    return %c0_i32, %c0_i32_0 : i32, i32
  }
  func.func @transform_4(%arg0: i32) -> (i32, i32) {
    %c0_i32 = arith.constant 0 : i32
    %c0_i32_0 = arith.constant 0 : i32
    %c0_i32_1 = arith.constant 0 : i32
    return %c0_i32, %c0_i32_0 : i32, i32
  }
  func.func @transform_5(%arg0: i32) -> (i32, i32) {
    %c0_i32 = arith.constant 0 : i32
    %c0_i32_0 = arith.constant 0 : i32
    return %arg0, %c0_i32 : i32, i32
  }
}

</mosaic_0001>

<llo_original>
// kernel: _lambda_.1
$region0: #{_lambda_.1}
  #allocation0 [shape = 'u32[]', space=smem, size = 0x4, offset = 0x4, fixed_abs, tag = 'smem constant byte address 0x4 - core index']
  #allocation1 [shape = 'u32[72,128]{1,0:T(1,128)}', space=vmem, size = 0x9000, scoped, tag = 'internal scratch']
  %s0 = inlined_call_operand.vmem [shape: bf16[16,64], index: 0, kind: input, shape index: {}]
  %s1 = inlined_call_operand.hbm [shape: bf16[64,128], index: 1, kind: input, shape index: {}]
  %s2 = inlined_call_operand.vmem [shape: f32[1,128], index: 2, kind: input, shape index: {}]
  %s3 = inlined_call_operand.hbm [shape: bf16[128,128], index: 3, kind: input, shape index: {}]
  %s4 = inlined_call_operand.vmem [shape: f32[1,128], index: 4, kind: input, shape index: {}]
  %s5 = inlined_call_operand.vmem [shape: f32[16,128], index: 5, kind: output, shape index: {}]
  %s6 = sld [smem:[#allocation0]]
  $region61: #{_lambda_.1} parent=0
    _
  %s8 = ssub.s32 1, %s6
  %s9 = scalar_select 0, %s8, %s6
  $region1: #{_lambda_.1} parent=0
    #allocation2 [shape = 'u8[16384]{0}', space=vmem, size = 0x4000, scoped, tag = 'input window, operand 1, single buffered']
    #allocation3 [shape = 's32[2]{0}', space=sflag, size = 0x8, scoped, tag = 'scoped memory for _lambda_.1']
    #allocation4 [shape = 'u8[32768]{0}', space=vmem, size = 0x8000, scoped, tag = 'input window, operand 3, single buffered']
    #allocation5 [shape = 's32[1]{0}', space=sflag, size = 0x4, scoped, tag = 'scoped memory for _lambda_.1']
    %10 = vsyncpa [#allocation3], 0
    %11 = vsyncpa [#allocation5], 0
    loop: start=0, step=1, limit=4
    $region2: #{_lambda_.1} parent=1 // loop_pre_header
      _
    $region3: #{_lambda_.1} parent=1 // loop_header
      %s13 = sphi 0, %s17
      %p14 = scmp.ge.s32.totalorder %s13, 4
      %s23 = sphi 0, %s25
      %s26 = sphi 0, %s23
      %s27 = sphi 0, %s26
      %s43 = sphi 0, %s27
      %s47 = sphi 0, %s47
      %s49 = sphi 0, %s47
      %s50 = sphi 0, %s49
      %s64 = sphi 0, %s50
      %s68 = sphi 0, %s68
      %s70 = sphi 0, %s68
      %s71 = sphi 0, %s70
      %s85 = sphi 0, %s71
      %s89 = sphi 0, %s89
      %s91 = sphi 0, %s89
      %s92 = sphi 0, %s91
      %s106 = sphi 0, %s92
      %s110 = sphi 0, %s110
      %s112 = sphi 0, %s110
      %s113 = sphi 0, %s112
      %s127 = sphi 0, %s113
      %s133 = sphi 0, %s135
      %s136 = sphi 0, %s133
      %s137 = sphi 0, %s136
      %s153 = sphi 0, %s137
    $region4: #{_lambda_.1} parent=1 // loop_header_branch
      %16 = sbr.rel (%p14) target = $region8
    $region5: #{_lambda_.1} parent=1 // loop_body
      %s18 = ssub.s32 %s13, 1
      %s19 = ssub.s32 %s13, 2
      %s20 = sadd.s32 %s13, 1
      %s21 = ssub.s32 %s13, %s20
      %p22 = scmp.eq.s32.totalorder %s21, 0
      %s24 = sadd.s32 %s23, 1
      %s25 = scalar_select %p22, %s23, %s24
      %p28 = pneg %p22
      %p29 = scmp.eq.s32.totalorder %s13, 1
      %p30 = por %p28, %p29
      %p31 = scmp.ne.s32.totalorder %s23, %s26
      %p32 = scmp.eq.s32.totalorder %s13, 0
      %p33 = por %p31, %p32
      %p34 = scmp.ne.s32.totalorder %s23, %s26
      %p35 = scmp.eq.s32.totalorder %s18, 1
      %p36 = por %p34, %p35
      %p37 = scmp.ne.s32.totalorder %s26, %s27
      %p38 = scmp.eq.s32.totalorder %s18, 0
      %p39 = por %p37, %p38
      %p40 = scmp.ne.s32.totalorder %s26, %s27
      %p41 = scmp.eq.s32.totalorder %s19, 1
      %p42 = por %p40, %p41
      %p44 = scmp.ne.s32.totalorder %s27, %s43
      %p45 = scmp.eq.s32.totalorder %s19, 0
      %p46 = por %p44, %p45
      %s48 = sadd.s32 %s47, 1
      %p51 = scmp.eq.s32.totalorder %s13, 1
      %p52 = scmp.ne.s32.totalorder %s47, %s49
      %p53 = scmp.eq.s32.totalorder %s13, 0
      %p54 = por %p52, %p53
      %p55 = scmp.ne.s32.totalorder %s47, %s49
      %p56 = scmp.eq.s32.totalorder %s18, 1
      %p57 = por %p55, %p56
      %p58 = scmp.ne.s32.totalorder %s49, %s50
      %p59 = scmp.eq.s32.totalorder %s18, 0
      %p60 = por %p58, %p59
      %p61 = scmp.ne.s32.totalorder %s49, %s50
      %p62 = scmp.eq.s32.totalorder %s19, 1
      %p63 = por %p61, %p62
      %p65 = scmp.ne.s32.totalorder %s50, %s64
      %p66 = scmp.eq.s32.totalorder %s19, 0
      %p67 = por %p65, %p66
      %s69 = sadd.s32 %s68, 1
      %p72 = scmp.eq.s32.totalorder %s13, 1
      %p73 = scmp.ne.s32.totalorder %s68, %s70
      %p74 = scmp.eq.s32.totalorder %s13, 0
      %p75 = por %p73, %p74
      %p76 = scmp.ne.s32.totalorder %s68, %s70
      %p77 = scmp.eq.s32.totalorder %s18, 1
      %p78 = por %p76, %p77
      %p79 = scmp.ne.s32.totalorder %s70, %s71
      %p80 = scmp.eq.s32.totalorder %s18, 0
      %p81 = por %p79, %p80
      %p82 = scmp.ne.s32.totalorder %s70, %s71
      %p83 = scmp.eq.s32.totalorder %s19, 1
      %p84 = por %p82, %p83
      %p86 = scmp.ne.s32.totalorder %s71, %s85
      %p87 = scmp.eq.s32.totalorder %s19, 0
      %p88 = por %p86, %p87
      %s90 = sadd.s32 %s89, 1
      %p93 = scmp.eq.s32.totalorder %s13, 1
      %p94 = scmp.ne.s32.totalorder %s89, %s91
      %p95 = scmp.eq.s32.totalorder %s13, 0
      %p96 = por %p94, %p95
      %p97 = scmp.ne.s32.totalorder %s89, %s91
      %p98 = scmp.eq.s32.totalorder %s18, 1
      %p99 = por %p97, %p98
      %p100 = scmp.ne.s32.totalorder %s91, %s92
      %p101 = scmp.eq.s32.totalorder %s18, 0
      %p102 = por %p100, %p101
      %p103 = scmp.ne.s32.totalorder %s91, %s92
      %p104 = scmp.eq.s32.totalorder %s19, 1
      %p105 = por %p103, %p104
      %p107 = scmp.ne.s32.totalorder %s92, %s106
      %p108 = scmp.eq.s32.totalorder %s19, 0
      %p109 = por %p107, %p108
      %s111 = sadd.s32 %s110, 1
      %p114 = scmp.eq.s32.totalorder %s13, 1
      %p115 = scmp.ne.s32.totalorder %s110, %s112
      %p116 = scmp.eq.s32.totalorder %s13, 0
      %p117 = por %p115, %p116
      %p118 = scmp.ne.s32.totalorder %s110, %s112
      %p119 = scmp.eq.s32.totalorder %s18, 1
      %p120 = por %p118, %p119
      %p121 = scmp.ne.s32.totalorder %s112, %s113
      %p122 = scmp.eq.s32.totalorder %s18, 0
      %p123 = por %p121, %p122
      %p124 = scmp.ne.s32.totalorder %s112, %s113
      %p125 = scmp.eq.s32.totalorder %s19, 1
      %p126 = por %p124, %p125
      %p128 = scmp.ne.s32.totalorder %s113, %s127
      %p129 = scmp.eq.s32.totalorder %s19, 0
      %p130 = por %p128, %p129
      %s131 = ssub.s32 %s13, %s20
      %p132 = scmp.eq.s32.totalorder %s131, 0
      %s134 = sadd.s32 %s133, 1
      %s135 = scalar_select %p132, %s133, %s134
      %p138 = pneg %p132
      %p139 = scmp.eq.s32.totalorder %s13, 1
      %p140 = por %p138, %p139
      %p141 = scmp.ne.s32.totalorder %s133, %s136
      %p142 = scmp.eq.s32.totalorder %s13, 0
      %p143 = por %p141, %p142
      %p144 = scmp.ne.s32.totalorder %s133, %s136
      %p145 = scmp.eq.s32.totalorder %s18, 1
      %p146 = por %p144, %p145
      %p147 = scmp.ne.s32.totalorder %s136, %s137
      %p148 = scmp.eq.s32.totalorder %s18, 0
      %p149 = por %p147, %p148
      %p150 = scmp.ne.s32.totalorder %s136, %s137
      %p151 = scmp.eq.s32.totalorder %s19, 1
      %p152 = por %p150, %p151
      %p154 = scmp.ne.s32.totalorder %s137, %s153
      %p155 = scmp.eq.s32.totalorder %s19, 0
      %p156 = por %p154, %p155
      %p157 = scmp.le.s32.totalorder 1, %s13
      %p158 = scmp.lt.s32.totalorder %s13, 3
      %p159 = pnand %p157, %p158
      %p160 = pneg %p159
      // Predicated region
      $region9: #{_lambda_.1} parent=5 // pred_check
        _
      $region10: #{_lambda_.1} parent=5 // pred_check_branch
        %162 = sbr.rel (%p159) target = $region12
      $region11: #{_lambda_.1} parent=5 // pred_region
        %s163 = ssub.s32 %s13, 1
        // Predicated region
        $region13: #{_lambda_.1} parent=11 // pred_check
          %p164 = pneg %p60
        $region14: #{_lambda_.1} parent=11 // pred_check_branch
          %166 = sbr.rel (%p164) target = $region16
        $region15: #{_lambda_.1} parent=11 // pred_region
          %168 = vsyncadd [#allocation3], 0
          %s169 = sshll.u32 %s1, 4
          %s170 = int_to_ptr.hbm [resolvable:$true] %s169
          %s171 = sshll.u32 [#allocation2], 4
          %s172 = int_to_ptr.vmem [resolvable:$true] %s171
          %177 = dma.hbm_to_vmem [thread:$0]  %s170, 512, %s172, [#allocation3], 64, 64, 4
        $region16: #{_lambda_.1} parent=11 // pred_fallthru
          _
        // Predicated region
        $region17: #{_lambda_.1} parent=11 // pred_check
          %p178 = pneg %p81
        $region18: #{_lambda_.1} parent=11 // pred_check_branch
          %180 = sbr.rel (%p178) target = $region20
        $region19: #{_lambda_.1} parent=11 // pred_region
          _
        $region20: #{_lambda_.1} parent=11 // pred_fallthru
          _
        // Predicated region
        $region21: #{_lambda_.1} parent=11 // pred_check
          %p181 = pneg %p102
        $region22: #{_lambda_.1} parent=11 // pred_check_branch
          %183 = sbr.rel (%p181) target = $region24
        $region23: #{_lambda_.1} parent=11 // pred_region
          %185 = vsyncadd [#allocation5], 0
          %s186 = sshll.u32 %s3, 4
          %s187 = int_to_ptr.hbm [resolvable:$true] %s186
          %s188 = sshll.u32 [#allocation4], 4
          %s189 = int_to_ptr.vmem [resolvable:$true] %s188
          %194 = dma.hbm_to_vmem [thread:$0]  %s187, 1024, %s189, [#allocation5], 64, 64, 4
        $region24: #{_lambda_.1} parent=11 // pred_fallthru
          _
        // Predicated region
        $region25: #{_lambda_.1} parent=11 // pred_check
          %p195 = pneg %p123
        $region26: #{_lambda_.1} parent=11 // pred_check_branch
          %197 = sbr.rel (%p195) target = $region28
        $region27: #{_lambda_.1} parent=11 // pred_region
          _
        $region28: #{_lambda_.1} parent=11 // pred_fallthru
          _
      $region12: #{_lambda_.1} parent=5 // pred_fallthru
        _
      %p198 = scmp.lt.s32.totalorder %s13, 2
      // Predicated region
      $region29: #{_lambda_.1} parent=5 // pred_check
        %p199 = pneg %p198
      $region30: #{_lambda_.1} parent=5 // pred_check_branch
        %201 = sbr.rel (%p199) target = $region32
      $region31: #{_lambda_.1} parent=5 // pred_region
        // Predicated region
        $region33: #{_lambda_.1} parent=31 // pred_check
          %p202 = pneg %p33
        $region34: #{_lambda_.1} parent=31 // pred_check_branch
          %204 = sbr.rel (%p202) target = $region36
        $region35: #{_lambda_.1} parent=31 // pred_region
          %p205 = scmp.lt.s32.totalorder %s13, 1
          %s206 = scalar_select %p205, %s13, 1
          %s207 = smul.addr %s206, 4
          %s208 = scalar_lea.vmem %s0, %s207
        $region36: #{_lambda_.1} parent=31 // pred_fallthru
          _
      $region32: #{_lambda_.1} parent=5 // pred_fallthru
        _
      %p209 = scmp.le.s32.totalorder 1, %s13
      %p210 = scmp.lt.s32.totalorder %s13, 3
      %p211 = pnand %p209, %p210
      %p212 = pneg %p211
      // Predicated region
      $region37: #{_lambda_.1} parent=5 // pred_check
        _
      $region38: #{_lambda_.1} parent=5 // pred_check_branch
        %214 = sbr.rel (%p211) target = $region40
      $region39: #{_lambda_.1} parent=5 // pred_region
        %s215 = ssub.s32 %s13, 1
        // Predicated region
        $region41: #{_lambda_.1} parent=39 // pred_check
          %p216 = pneg %p60
        $region42: #{_lambda_.1} parent=39 // pred_check_branch
          %218 = sbr.rel (%p216) target = $region44
        $region43: #{_lambda_.1} parent=39 // pred_region
          %220 = dma.done [#allocation3], 512
        $region44: #{_lambda_.1} parent=39 // pred_fallthru
          _
        // Predicated region
        $region45: #{_lambda_.1} parent=39 // pred_check
          %p221 = pneg %p102
        $region46: #{_lambda_.1} parent=39 // pred_check_branch
          %223 = sbr.rel (%p221) target = $region48
        $region47: #{_lambda_.1} parent=39 // pred_region
          %225 = dma.done [#allocation5], 1024
        $region48: #{_lambda_.1} parent=39 // pred_fallthru
          _
        %p226 = scmp.lt.s32.totalorder %s18, 1
        %s227 = scalar_select %p226, %s18, 1
        %s228 = smul.addr %s227, 4
        %s229 = scalar_lea.vmem %s0, %s228
        %p230 = pneg %p39
        %p231 = pneg %p36
        %p232 = pneg %p60
        %p233 = pneg %p57
        %p234 = pneg %p81
        %p235 = pneg %p78
        %p236 = pneg %p102
        %p237 = pneg %p99
        %p238 = pneg %p123
        %p239 = pneg %p120
        %p240 = pneg %p149
        %p241 = pneg %p146
        %p242 = scmp.lt.s32.totalorder %s18, 1
        %s243 = scalar_select %p242, %s18, 1
        %s244 = smul.addr %s243, 8
        %s245 = scalar_lea.vmem %s5, %s244
        %p246 = scmp.lt.s32.totalorder %s18, 1
        %s247 = scalar_select %p246, %s18, 1
        %s248 = smul.addr %s247, 4
        %s249 = scalar_lea.vmem %s0, %s248
        %p250 = scmp.lt.s32.totalorder %s18, 1
        %s251 = scalar_select %p250, %s18, 1
        %s252 = smul.addr %s251, 8
        %s253 = scalar_lea.vmem %s5, %s252
        %v255 = vld [vmem:[%s249] sm:$0xf]
        %v256 = vld [vmem:[#allocation2] sm:$0xf]
        %v257 = vld [vmem:[#allocation2 + $0x4] sm:$0xf]
        %v258 = vld [vmem:[#allocation2 + $0x8] sm:$0xf]
        %v259 = vld [vmem:[#allocation2 + $0xc] sm:$0xf]
        %v260 = vld [vmem:[#allocation2 + $0x10] sm:$0xf]
        %v261 = vld [vmem:[#allocation2 + $0x14] sm:$0xf]
        %v262 = vld [vmem:[#allocation2 + $0x18] sm:$0xf]
        %v263 = vld [vmem:[#allocation2 + $0x1c] sm:$0xf]
        %v264 = vld [vmem:[%s2] sm:$0x1]
        %v266 = vperm.slane %v264, 0
        %v276 = vunpack.c.l.b16 %v256
        %v277 = vunpack.c.l.b16 %v257
        %v278 = vunpack.c.l.b16 %v258
        %v279 = vunpack.c.l.b16 %v259
        %v280 = vunpack.c.l.b16 %v260
        %v281 = vunpack.c.l.b16 %v261
        %v282 = vunpack.c.l.b16 %v262
        %v283 = vunpack.c.l.b16 %v263
        %v284 = vpack.c.b16 %v277, %v276
        %v285 = vpack.c.b16 %v279, %v278
        %v286 = vpack.c.b16 %v281, %v280
        %v287 = vpack.c.b16 %v283, %v282
        %vm292 = vcmask 523264
        %v294 = vsel %vm292, %v255, 0
        %296 = vmatpush.bf16.msra.mxu0 0
        %297 = vmatpush.bf16.msra.mxu0 0
        %298 = vmatpush.bf16.msra.mxu0 0
        %299 = vmatpush.bf16.msra.mxu0 0
        %300 = vmatpush.bf16.msra.mxu0 %v287
        %301 = vmatpush.bf16.msra.mxu0 %v286
        %302 = vmatpush.bf16.msra.mxu0 %v285
        %303 = vmatpush.bf16.msra.mxu0 %v284
        %304 = vmatmul.bf16.gmra.mxu0 %v294
        %v305 = vpop.f32.mrf.mxu0
        %v306 = vadd.f32 %v266, %v305
        %v307 = vpop.f32.mrf.mxu0
        %308 = vdwg.mxu0
        %v309 = vpack.c.bf16 %v306, %v306
        %v310 = vld [vmem:[#allocation4] sm:$0xf]
        %v311 = vld [vmem:[#allocation4 + $0x4] sm:$0xf]
        %v312 = vld [vmem:[#allocation4 + $0x8] sm:$0xf]
        %v313 = vld [vmem:[#allocation4 + $0xc] sm:$0xf]
        %v314 = vld [vmem:[#allocation4 + $0x10] sm:$0xf]
        %v315 = vld [vmem:[#allocation4 + $0x14] sm:$0xf]
        %v316 = vld [vmem:[#allocation4 + $0x18] sm:$0xf]
        %v317 = vld [vmem:[#allocation4 + $0x1c] sm:$0xf]
        %v318 = vld [vmem:[#allocation4 + $0x20] sm:$0xf]
        %v319 = vld [vmem:[#allocation4 + $0x24] sm:$0xf]
        %v320 = vld [vmem:[#allocation4 + $0x28] sm:$0xf]
        %v321 = vld [vmem:[#allocation4 + $0x2c] sm:$0xf]
        %v322 = vld [vmem:[#allocation4 + $0x30] sm:$0xf]
        %v323 = vld [vmem:[#allocation4 + $0x34] sm:$0xf]
        %v324 = vld [vmem:[#allocation4 + $0x38] sm:$0xf]
        %v325 = vld [vmem:[#allocation4 + $0x3c] sm:$0xf]
        %v326 = vld [vmem:[%s4] sm:$0x1]
        %v328 = vperm.slane %v326, 0
        %v346 = vunpack.c.l.b16 %v310
        %v347 = vunpack.c.l.b16 %v311
        %v348 = vunpack.c.l.b16 %v312
        %v349 = vunpack.c.l.b16 %v313
        %v350 = vunpack.c.l.b16 %v314
        %v351 = vunpack.c.l.b16 %v315
        %v352 = vunpack.c.l.b16 %v316
        %v353 = vunpack.c.l.b16 %v317
        %v354 = vunpack.c.l.b16 %v318
        %v355 = vunpack.c.l.b16 %v319
        %v356 = vunpack.c.l.b16 %v320
        %v357 = vunpack.c.l.b16 %v321
        %v358 = vunpack.c.l.b16 %v322
        %v359 = vunpack.c.l.b16 %v323
        %v360 = vunpack.c.l.b16 %v324
        %v361 = vunpack.c.l.b16 %v325
        %v362 = vpack.c.b16 %v347, %v346
        %v363 = vpack.c.b16 %v349, %v348
        %v364 = vpack.c.b16 %v351, %v350
        %v365 = vpack.c.b16 %v353, %v352
        %v366 = vpack.c.b16 %v355, %v354
        %v367 = vpack.c.b16 %v357, %v356
        %v368 = vpack.c.b16 %v359, %v358
        %v369 = vpack.c.b16 %v361, %v360
        %378 = vmatpush.bf16.msra.mxu0 %v369
        %379 = vmatpush.bf16.msra.mxu0 %v368
        %380 = vmatpush.bf16.msra.mxu0 %v367
        %381 = vmatpush.bf16.msra.mxu0 %v366
        %382 = vmatpush.bf16.msra.mxu0 %v365
        %383 = vmatpush.bf16.msra.mxu0 %v364
        %384 = vmatpush.bf16.msra.mxu0 %v363
        %385 = vmatpush.bf16.msra.mxu0 %v362
        %386 = vmatmul.bf16.gmra.mxu0 %v309
        %v387 = vpop.f32.mrf.mxu0
        %v388 = vadd.f32 %v328, %v387
        %v389 = vpop.f32.mrf.mxu0
        %390 = vdwg.mxu0
        %v391 = vlaneseq
        %v392 = vand.u32 %v391, 127
        %v393 = vand.u32 %v392, 3
        %vm394 = vcmp.eq.s32.totalorder %v393, 3
        %v395 = vmax.f32 %v388, 0.0
        %v396 = vtanh.pop %v388
        %v397 = vsel %vm394, %v395, %v396
        %398 = vst [vmem:[%s253] sm:$0xff] %v397
        %p399 = scmp.lt.s32.totalorder %s18, 1
        %s400 = scalar_select %p399, %s18, 1
        %s401 = smul.addr %s400, 8
        %s402 = scalar_lea.vmem %s5, %s401
        // Predicated region
        $region49: #{_lambda_.1} parent=39 // pred_check
          %p403 = pneg %p146
        $region50: #{_lambda_.1} parent=39 // pred_check_branch
          %405 = sbr.rel (%p403) target = $region52
        $region51: #{_lambda_.1} parent=39 // pred_region
          _
        $region52: #{_lambda_.1} parent=39 // pred_fallthru
          _
      $region40: #{_lambda_.1} parent=5 // pred_fallthru
        _
      %p406 = scmp.le.s32.totalorder 2, %s13
      // Predicated region
      $region53: #{_lambda_.1} parent=5 // pred_check
        %p407 = pneg %p406
      $region54: #{_lambda_.1} parent=5 // pred_check_branch
        %409 = sbr.rel (%p407) target = $region56
      $region55: #{_lambda_.1} parent=5 // pred_region
        %s410 = ssub.s32 %s13, 2
        // Predicated region
        $region57: #{_lambda_.1} parent=55 // pred_check
          %p411 = pneg %p152
        $region58: #{_lambda_.1} parent=55 // pred_check_branch
          %413 = sbr.rel (%p411) target = $region60
        $region59: #{_lambda_.1} parent=55 // pred_region
          %p414 = scmp.lt.s32.totalorder %s19, 1
          %s415 = scalar_select %p414, %s19, 1
          %s416 = smul.addr %s415, 8
          %s417 = scalar_lea.vmem %s5, %s416
        $region60: #{_lambda_.1} parent=55 // pred_fallthru
          _
      $region56: #{_lambda_.1} parent=5 // pred_fallthru
        _
    $region6: #{_lambda_.1} parent=1 // loop_footer
      %s17 = sadd.s32 1, %s13
    $region7: #{_lambda_.1} parent=1 // loop_footer_branch
      %12 = sbr.rel target = $region3
    $region8: #{_lambda_.1} parent=1 // loop_exit
      _
    %418 = vsyncpa [#allocation3], 1
    %s419 = scalar_lea.sflag [#allocation3], 1
    %420 = vsyncpa %s419, 1
    %421 = vsyncpa [#allocation5], 1

</llo_original>
